<compile_context>
chip_gen: v5e
topology: v5e:2x2
jax: 0.10.0
libtpu: 0.0.40
codegen_flags: <defaults>
</compile_context>

<pallas_src>
import numpy as np
import jax
import jax.numpy as jnp
from jax.experimental import pallas as pl
from jax.experimental.pallas import tpu as pltpu


def _const_input_kernel(const_ref, o_ref):
    # const_ref: (1, L)   VMEM block holding the flattened learned constant
    #                     (resident across all grid steps: index_map is (0,0)).
    # o_ref:     (bb, L)  VMEM block of the output (one batch block).
    # The replication below is hidden behind the output DMA (write-bound op);
    # a pl.when(program_id==0)-initialized scratch would break under megacore
    # "parallel" sharding, so we deliberately keep the per-step broadcast.
    o_ref[...] = jnp.broadcast_to(const_ref[...], o_ref.shape)


def _round_up(x, m):
    return ((x + m - 1) // m) * m


def constant_input_forward(
    const_param,
    x,
    *,
    block_batch=256,
    vmem_block_budget_bytes=8 * 1024 * 1024,
):
    """ConstantInput.forward equivalent.

    const_param: (1, C, S, S) learned constant (the nn.Parameter).
    x:           any array; only x.shape[0] (batch) is used, matching PyTorch.
    Returns:     (batch, C, S, S) array = const_param tiled over batch.
    """
    batch = x.shape[0]
    one, c, s1, s2 = const_param.shape
    assert one == 1
    L = c * s1 * s2
    itemsize = jnp.dtype(const_param.dtype).itemsize

    # Metadata-only reshape to a lane-dense (1, L) layout.
    const_flat = const_param.reshape(1, L)

    # ---- batch block sizing -------------------------------------------------
    # VMEM cap: each output block <= vmem_block_budget_bytes so the
    # double-buffered pair (+ the tiny constant block) stays well under v7x's
    # 32 MiB scoped default.  Re-derived from L and dtype, so larger C/size or
    # f32 vs bf16 automatically shrink bb instead of OOM-ing.
    bb_cap = max(1, vmem_block_budget_bytes // (L * itemsize))
    bb = min(batch, block_batch, bb_cap)

    # Megacore (v7x has 2 TensorCores): keep >= 2 grid steps when the batch is
    # large enough so the "parallel" axis actually splits the write stream.
    if batch >= 16:
        bb = min(bb, _round_up(pl.cdiv(batch, 2), 8))

    if bb < batch:
        # A block that does not span the full batch dim must have its
        # second-to-last dim be a multiple of 8 (sublane tile rule).
        bb = max(8, (bb // 8) * 8)
        if bb >= batch:
            bb = batch

    grid = (pl.cdiv(batch, bb),)

    out_flat = pl.pallas_call(
        _const_input_kernel,
        out_shape=jax.ShapeDtypeStruct((batch, L), const_param.dtype),
        grid=grid,
        in_specs=[
            # Constant block index is always (0, 0): fetched from HBM once,
            # resident in VMEM for every grid step.
            pl.BlockSpec((1, L), lambda i: (0, 0)),
        ],
        out_specs=pl.BlockSpec((bb, L), lambda i: (i, 0)),
        compiler_params=pltpu.CompilerParams(
            dimension_semantics=("parallel",),
        ),
        cost_estimate=pl.CostEstimate(
            flops=0,
            transcendentals=0,
            bytes_accessed=(batch + 1) * L * itemsize,
        ),
    )(const_flat)

    return out_flat.reshape(batch, c, s1, s2)


def _reference(const_param, x):
    """Pure-JAX reference of ConstantInput.forward."""
    batch = x.shape[0]
    return jnp.broadcast_to(const_param, (batch,) + const_param.shape[1:])


if __name__ == "__main__":
    key = jax.random.PRNGKey(0)
    k_const, k_in1, k_in2 = jax.random.split(key, 3)

    # Shapes consistent with the module: ConstantInput(channel=8, size=4).
    # The `input` tensor only contributes its batch dimension, so a small
    # latent-style tensor stands in for it.
    channel, size = 8, 4
    const_param = jax.random.normal(
        k_const, (1, channel, size, size), dtype=jnp.float32
    )

    # Case 1: small batch — single grid step, block spans the full batch.
    batch1 = 2
    x1 = jax.random.normal(k_in1, (batch1, 32), dtype=jnp.float32)
    out1 = jax.block_until_ready(constant_input_forward(const_param, x1))
    ref1 = jax.block_until_ready(_reference(const_param, x1))
    assert out1.shape == (batch1, channel, size, size), out1.shape
    np.testing.assert_allclose(np.asarray(out1), np.asarray(ref1), rtol=0, atol=0)

    # Case 2: batch not divisible by the block (batch=12, bb=8) — exercises
    # the masked partial-block writeback on the last grid step.
    batch2 = 12
    x2 = jax.random.normal(k_in2, (batch2, 32), dtype=jnp.float32)
    out2 = jax.block_until_ready(
        constant_input_forward(const_param, x2, block_batch=8)
    )
    ref2 = jax.block_until_ready(_reference(const_param, x2))
    assert out2.shape == (batch2, channel, size, size), out2.shape
    np.testing.assert_allclose(np.asarray(out2), np.asarray(ref2), rtol=0, atol=0)

    print("KERNEL_OK")
</pallas_src>

<mosaic_0001>
module attributes {stable_mosaic.version = 11 : i64} {
  func.func @_const_input_kernel(%arg0: i32, %arg1: memref<1x128xf32, #tpu.memory_space<vmem>>, %arg2: memref<2x128xf32, #tpu.memory_space<vmem>>) attributes {dimension_semantics = [#tpu.dimension_semantics<parallel>], iteration_bounds = array<i64: 1>, scalar_prefetch = 0 : i64, scratch_operands = 0 : i64, tpu.core_type = #tpu.core_type<tc>, window_params = [{pipeline_mode = #tpu.pipeline_mode<synchronous>, transform_indices = @transform_0, window_bounds = array<i64: 1, 128>}, {transform_indices = @transform_1, window_bounds = array<i64: 2, 128>}]} {
    %c0 = arith.constant 0 : index
    %c0_0 = arith.constant 0 : index
    %0 = vector.load %arg1[%c0, %c0_0] : memref<1x128xf32, #tpu.memory_space<vmem>>, vector<1x128xf32>
    %1 = vector.shape_cast %0 : vector<1x128xf32> to vector<1x128xf32>
    %2 = vector.broadcast %1 : vector<1x128xf32> to vector<2x128xf32>
    %c0_1 = arith.constant 0 : index
    %c0_2 = arith.constant 0 : index
    %3 = vector.load %arg2[%c0_1, %c0_2] : memref<2x128xf32, #tpu.memory_space<vmem>>, vector<2x128xf32>
    tpu.vector_store %arg2[%c0_1, %c0_2], %2 {strides = array<i32>} : memref<2x128xf32, #tpu.memory_space<vmem>>, vector<2x128xf32>,
    return
  }
  func.func @transform_0(%arg0: i32) -> (i32, i32) {
    %c0_i32 = arith.constant 0 : i32
    %c0_i32_0 = arith.constant 0 : i32
    %c0_i32_1 = arith.constant 0 : i32
    return %c0_i32, %c0_i32_0 : i32, i32
  }
  func.func @transform_1(%arg0: i32) -> (i32, i32) {
    %c0_i32 = arith.constant 0 : i32
    %c0_i32_0 = arith.constant 0 : i32
    return %arg0, %c0_i32 : i32, i32
  }
}

</mosaic_0001>

<llo_original>
// kernel: tpu_custom_call.1
$region0: #{tpu_custom_call.1}
  #allocation0 [shape = 'u32[]', space=smem, size = 0x4, offset = 0x4, fixed_abs, tag = 'smem constant byte address 0x4 - core index']
  #allocation1 [shape = 'u32[72,128]{1,0:T(1,128)}', space=vmem, size = 0x9000, scoped, tag = 'internal scratch']
  %s0 = inlined_call_operand.hbm [shape: f32[1,128], index: 0, kind: input, shape index: {}]
  %s1 = inlined_call_operand.hbm [shape: f32[2,128], index: 1, kind: output, shape index: {}]
  %s2 = sld [smem:[#allocation0]]
  $region18: #{tpu_custom_call.1} parent=0
    _
  %s4 = ssub.s32 1, %s2
  %s5 = scalar_select 0, %s4, %s2
  $region1: #{tpu_custom_call.1} parent=0
    #allocation2 [shape = 'u8[512]{0}', space=vmem, size = 0x400, scoped, tag = 'input window, operand 0, single buffered']
    #allocation3 [shape = 's32[1]{0}', space=sflag, size = 0x4, scoped, tag = 'scoped memory for tpu_custom_call.1']
    #allocation4 [shape = 's32[1]{0}', space=sflag, size = 0x4, scoped, tag = 'scoped memory for tpu_custom_call.1']
    #allocation5 [shape = 'u8[1024]{0}', space=vmem, size = 0x400, scoped, tag = 'output window, operand 0, single buffered']
    %6 = vsyncpa [#allocation3], 0
    %7 = vsyncpa [#allocation4], 0
    // Predicated region
    $region2: #{tpu_custom_call.1} parent=1 // pred_check
      _
    $region3: #{tpu_custom_call.1} parent=1 // pred_check_branch
      %9 = sbr.rel (0) target = $region5
    $region4: #{tpu_custom_call.1} parent=1 // pred_region
      %11 = vsyncadd [#allocation3], 0
      %s13 = sshll.u32 %s0, 4
      %s14 = int_to_ptr.hbm [resolvable:$true] %s13
      %s15 = sshll.u32 [#allocation2], 4
      %s16 = int_to_ptr.vmem [resolvable:$true] %s15
      %18 = dma.hbm_to_vmem [thread:$0]  %s14, 16, %s16, [#allocation3]
    $region5: #{tpu_custom_call.1} parent=1 // pred_fallthru
      _
    // Predicated region
    $region6: #{tpu_custom_call.1} parent=1 // pred_check
      _
    $region7: #{tpu_custom_call.1} parent=1 // pred_check_branch
      %20 = sbr.rel (0) target = $region9
    $region8: #{tpu_custom_call.1} parent=1 // pred_region
      %22 = dma.done [#allocation3], 16
    $region9: #{tpu_custom_call.1} parent=1 // pred_fallthru
      _
    %v23 = vld [vmem:[#allocation2] sm:$0x1]
    %v25 = vperm.slane %v23, 0
    %27 = vst [vmem:[#allocation5] sm:$0x3] %v25
    // Predicated region
    $region10: #{tpu_custom_call.1} parent=1 // pred_check
      _
    $region11: #{tpu_custom_call.1} parent=1 // pred_check_branch
      %29 = sbr.rel (0) target = $region13
    $region12: #{tpu_custom_call.1} parent=1 // pred_region
      %31 = vsyncadd [#allocation4], 0
      %s33 = sshll.u32 [#allocation5], 4
      %s34 = int_to_ptr.vmem [resolvable:$true] %s33
      %s35 = sshll.u32 %s1, 4
      %s36 = int_to_ptr.hbm [resolvable:$true] %s35
      %38 = dma.vmem_to_hbm [thread:$0]  %s34, 32, %s36, [#allocation4]
    $region13: #{tpu_custom_call.1} parent=1 // pred_fallthru
      _
    // Predicated region
    $region14: #{tpu_custom_call.1} parent=1 // pred_check
      _
    $region15: #{tpu_custom_call.1} parent=1 // pred_check_branch
      %40 = sbr.rel (0) target = $region17
    $region16: #{tpu_custom_call.1} parent=1 // pred_region
      %42 = dma.done [#allocation4], 32
    $region17: #{tpu_custom_call.1} parent=1 // pred_fallthru
      _
    %43 = vsyncpa [#allocation3], 1
    %44 = vsyncpa [#allocation4], 1

</llo_original>
